<compile_context>
chip_gen: v7x
topology: tpu7x:2x2x1
jax: 0.10.0
libtpu: 0.0.40
codegen_flags: <defaults>
</compile_context>

<pallas_src>
import functools

import jax
import jax.numpy as jnp
from jax.experimental import pallas as pl
from jax.experimental.pallas import tpu as pltpu


# ---------------------------------------------------------------------------
# Kernel
# ---------------------------------------------------------------------------
def _dynamic_gating_kernel(t_ref, i_ref, wt_ref, wi_ref, p_ref, o_ref, *, eps):
    """One (TM, D) row tile of  LayerNorm( gate*t + (1-gate)*im ).

    t_ref / i_ref : (TM, D) activation-dtype tiles of text / image features.
    wt_ref/wi_ref : (D, D)  halves of gate_fc.weight, pre-transposed.
    p_ref         : (8, D)  f32; row 0 = gate bias, row 1 = ln gamma, row 2 = ln beta.
    """
    # Hoist the constant (8, D) load once (JAX does not CSE broadcast_in_dim).
    params = p_ref[...]
    bias = params[0:1, :]
    gamma = params[1:2, :]
    beta = params[2:3, :]

    t = t_ref[...]
    im = i_ref[...]

    # gate = sigmoid(cat([t, im]) @ W.T + b)  ==  sigmoid(t @ Wt + im @ Wi + b)
    # Operands stay in the activation dtype (bf16 models hit the bf16 MXU path);
    # accumulation / epilogue are f32.
    logits = (jnp.dot(t, wt_ref[...], preferred_element_type=jnp.float32)
              + jnp.dot(im, wi_ref[...], preferred_element_type=jnp.float32)
              + bias)
    gate = jax.nn.sigmoid(logits)

    # fused = gate*t + (1-gate)*im  ==  im + gate*(t - im); one extra f32 temp only.
    im32 = im.astype(jnp.float32)
    fused = im32 + gate * (t - im).astype(jnp.float32)

    # TODO(synk): dropout is identity here (inference / eval semantics).

    # LayerNorm over features (biased variance, eps inside rsqrt), all in f32.
    mean = jnp.mean(fused, axis=-1, keepdims=True)
    centered = fused - mean
    var = jnp.mean(centered * centered, axis=-1, keepdims=True)
    norm = centered * jax.lax.rsqrt(var + eps)
    o_ref[...] = (norm * gamma + beta).astype(o_ref.dtype)


# ---------------------------------------------------------------------------
# Tiling / budgeting helpers
# ---------------------------------------------------------------------------
def _round_up(x, m):
    return ((x + m - 1) // m) * m


def _vmem_limit_bytes():
    """Per-generation scoped-VMEM limit: 11/16 of physical VMEM.

    -> ~44 MiB on v7x (64 MiB physical), ~88 MiB on v5e/v6e (128 MiB physical),
    leaving headroom for compiler scratch / spills on every generation.
    """
    try:
        physical = int(pltpu.get_tpu_info().vmem_capacity_bytes)
    except Exception:
        physical = 64 * 1024 * 1024  # conservative (v7x-sized) fallback
    return (physical * 11) // 16


def _cores_per_device():
    """TensorCores per device (2 on v7x, 1 on v5e/v6e). Heuristic only affects tiling."""
    try:
        dev = jax.devices()[0]
        n = getattr(dev, "num_cores", None)
        if n:
            return int(n)
        if "v7" in str(getattr(dev, "device_kind", "")).lower():
            return 2
    except Exception:
        pass
    return 1


def _pick_row_tile(rows, d_model, act_dtype, weight_dtype, vmem_limit):
    """Sublane-aligned, VMEM-budgeted row tile with >= 2 grid steps per TensorCore.

    Returns 0 if the resident (D, D) weight halves cannot fit the budget.
    """
    itemsize = jnp.dtype(act_dtype).itemsize
    align = max(8, 32 // itemsize)  # 8 rows f32, 16 bf16, 32 int8/fp8
    if rows <= align:
        return rows  # full-extent block is always legal

    budget = vmem_limit - 4 * 1024 * 1024  # fixed headroom for compiler scratch

    # Resident, single-buffered operands: Wt + Wi + packed (8, D) f32 params.
    w_itemsize = jnp.dtype(weight_dtype).itemsize
    fixed_bytes = 2 * d_model * d_model * w_itemsize + 8 * d_model * 4

    # Per-row cost: double-buffered text/image/out tiles + ~5 live f32 epilogue temps
    # (logits/gate, diff, fused, centered, norm) the pipeline accounting doesn't see.
    per_row = 3 * 2 * d_model * itemsize + 5 * d_model * 4

    cap = (budget - fixed_bytes) // per_row
    if cap < align:
        return 0  # weights don't fit resident -> caller must stream / fall back

    cap = int(min(1024, cap))  # 512-1024 rows is the measured HBM-roofline sweet spot
    cap -= cap % align

    # >= 2 grid steps per TensorCore so every core keeps a double-buffered pipeline.
    target_steps = 2 * _cores_per_device()
    per_step = _round_up(pl.cdiv(rows, target_steps), align)
    tile = max(align, min(cap, per_step))
    return min(tile, rows)


# ---------------------------------------------------------------------------
# One-time parameter preparation (hoisted out of the hot path)
# ---------------------------------------------------------------------------
def prepare_dynamic_gating_params(gate_w, gate_b, ln_gamma, ln_beta, act_dtype=None):
    """Split/transpose/cast gate_fc.weight and pack bias/gamma/beta once.

    gate_w: (D, 2D) -- nn.Linear(2D, D).weight.  Returns (wt, wi, packed) where
    wt/wi are (D, D) in `act_dtype` and packed is a padded (8, D) f32 block
    holding [bias; gamma; beta].  Call this at parameter-load time, not per step.
    """
    d_model = gate_w.shape[0]
    assert gate_w.shape == (d_model, 2 * d_model)
    if act_dtype is None:
        act_dtype = gate_w.dtype
    wt = jnp.asarray(gate_w[:, :d_model].T, dtype=act_dtype)  # (D, D), text half
    wi = jnp.asarray(gate_w[:, d_model:].T, dtype=act_dtype)  # (D, D), image half
    packed = jnp.zeros((8, d_model), dtype=jnp.float32)
    packed = packed.at[0].set(gate_b.astype(jnp.float32))
    packed = packed.at[1].set(ln_gamma.astype(jnp.float32))
    packed = packed.at[2].set(ln_beta.astype(jnp.float32))
    return wt, wi, packed


def _dynamic_gating_xla(t2, i2, wt, wi, packed, eps):
    """Fallback for d_model so large that resident weights can't fit VMEM."""
    bias, gamma, beta = packed[0:1], packed[1:2], packed[2:3]
    logits = (t2.astype(jnp.float32) @ wt.astype(jnp.float32)
              + i2.astype(jnp.float32) @ wi.astype(jnp.float32) + bias)
    gate = jax.nn.sigmoid(logits)
    im32 = i2.astype(jnp.float32)
    fused = im32 + gate * (t2.astype(jnp.float32) - im32)
    mean = jnp.mean(fused, axis=-1, keepdims=True)
    var = jnp.mean((fused - mean) ** 2, axis=-1, keepdims=True)
    return (fused - mean) * jax.lax.rsqrt(var + eps) * gamma + beta


# ---------------------------------------------------------------------------
# Wrapper
# ---------------------------------------------------------------------------
def dynamic_gating(text_features, image_features, prepared_params, *, row_tile=None,
                   eps=1e-5):
    """text_features, image_features: (..., D). prepared_params from
    prepare_dynamic_gating_params()."""
    if image_features is None:
        return text_features

    wt, wi, packed = prepared_params
    orig_shape = text_features.shape
    d_model = orig_shape[-1]
    # Match torch promotion semantics if the two inputs differ in dtype.
    act_dtype = jnp.promote_types(text_features.dtype, image_features.dtype)
    t2 = text_features.reshape(-1, d_model).astype(act_dtype)
    i2 = image_features.reshape(-1, d_model).astype(act_dtype)
    rows = t2.shape[0]

    vmem_limit = _vmem_limit_bytes()
    if row_tile is None:
        row_tile = _pick_row_tile(rows, d_model, act_dtype, wt.dtype, vmem_limit)

    if row_tile == 0:
        # Resident (D, D) weight halves do not fit the per-generation VMEM budget.
        # TODO(synk): stream Wt/Wi panels from HBM (pl.ANY + pltpu.emit_pipeline)
        # instead of this XLA fallback for very large d_model.
        out = _dynamic_gating_xla(t2, i2, wt, wi, packed, eps).astype(act_dtype)
        return out.reshape(orig_shape)

    grid = (pl.cdiv(rows, row_tile),)
    kernel = functools.partial(_dynamic_gating_kernel, eps=eps)

    itemsize = jnp.dtype(act_dtype).itemsize
    w_itemsize = jnp.dtype(wt.dtype).itemsize
    cost = pl.CostEstimate(
        flops=4 * rows * d_model * d_model + 10 * rows * d_model,
        transcendentals=rows * d_model + rows,              # sigmoid exp + rsqrt
        bytes_accessed=(3 * rows * d_model * itemsize       # text + image + out
                        + 2 * d_model * d_model * w_itemsize  # Wt + Wi
                        + 8 * d_model * 4),                   # packed params
    )

    def _tile_spec():
        return pl.BlockSpec((row_tile, d_model), lambda i: (i, 0))

    def _resident_spec(shape):
        # Grid-invariant operand: single-buffer it (double-buffering buys nothing).
        idx = lambda i: tuple(0 for _ in shape)
        try:
            return pl.BlockSpec(shape, idx, pipeline_mode=pl.Buffered(1))
        except (TypeError, AttributeError):
            return pl.BlockSpec(shape, idx)

    out = pl.pallas_call(
        kernel,
        out_shape=jax.ShapeDtypeStruct((rows, d_model), act_dtype),
        grid_spec=pltpu.PrefetchScalarGridSpec(
            num_scalar_prefetch=0,
            grid=grid,
            in_specs=[
                _tile_spec(),                         # text tile
                _tile_spec(),                         # image tile
                _resident_spec((d_model, d_model)),   # Wt (resident, single-buffered)
                _resident_spec((d_model, d_model)),   # Wi (resident, single-buffered)
                _resident_spec((8, d_model)),         # packed bias / gamma / beta
            ],
            out_specs=pl.BlockSpec((row_tile, d_model), lambda i: (i, 0)),
        ),
        compiler_params=pltpu.CompilerParams(
            dimension_semantics=("parallel",),
            vmem_limit_bytes=vmem_limit,
        ),
        cost_estimate=cost,
    )(t2, i2, wt, wi, packed)

    return out.reshape(orig_shape)


# ---------------------------------------------------------------------------
# Reference + demo
# ---------------------------------------------------------------------------
def _reference(text, image, gate_w, gate_b, gamma, beta, eps=1e-5):
    combined = jnp.concatenate([text, image], axis=-1)
    logits = jnp.dot(combined, gate_w.T,
                     precision=jax.lax.Precision.HIGHEST) + gate_b
    gate = jax.nn.sigmoid(logits)
    fused = gate * text + (1.0 - gate) * image
    mean = jnp.mean(fused, axis=-1, keepdims=True)
    var = jnp.mean((fused - mean) ** 2, axis=-1, keepdims=True)
    return (fused - mean) / jnp.sqrt(var + eps) * gamma + beta


if __name__ == "__main__":
    # Lane-dense d_model (multiple of 128) and enough rows for a multi-step grid,
    # while staying small.
    B, S, D = 2, 64, 128
    key = jax.random.PRNGKey(0)
    k1, k2, k3, k4 = jax.random.split(key, 4)

    text_features = jax.random.normal(k1, (B, S, D), dtype=jnp.float32)
    image_features = jax.random.normal(k2, (B, S, D), dtype=jnp.float32)

    # Deterministic parameter init (nn.Linear(2D, D) / nn.LayerNorm(D) shapes).
    bound = 1.0 / (2 * D) ** 0.5
    gate_w = jax.random.uniform(k3, (D, 2 * D), minval=-bound, maxval=bound,
                                dtype=jnp.float32)
    gate_b = jax.random.uniform(k4, (D,), minval=-bound, maxval=bound,
                                dtype=jnp.float32)
    ln_gamma = jnp.ones((D,), dtype=jnp.float32)
    ln_beta = jnp.zeros((D,), dtype=jnp.float32)

    # One-time weight prep (split / transpose / cast / pack) outside the hot path.
    prepared = prepare_dynamic_gating_params(gate_w, gate_b, ln_gamma, ln_beta,
                                             act_dtype=text_features.dtype)

    out = dynamic_gating(text_features, image_features, prepared)
    out = jax.block_until_ready(out)

    ref = _reference(text_features, image_features, gate_w, gate_b,
                     ln_gamma, ln_beta)
    assert out.shape == (B, S, D)
    assert jnp.allclose(out, ref, atol=3e-3, rtol=3e-3), "mismatch vs reference"

    print("KERNEL_OK")
</pallas_src>

<mosaic_0001>
module attributes {stable_mosaic.version = 11 : i64} {
  func.func @_dynamic_gating_kernel(%arg0: i32, %arg1: memref<64x128xf32, #tpu.memory_space<vmem>>, %arg2: memref<64x128xf32, #tpu.memory_space<vmem>>, %arg3: memref<128x128xf32, #tpu.memory_space<vmem>>, %arg4: memref<128x128xf32, #tpu.memory_space<vmem>>, %arg5: memref<8x128xf32, #tpu.memory_space<vmem>>, %arg6: memref<64x128xf32, #tpu.memory_space<vmem>>) attributes {dimension_semantics = [#tpu.dimension_semantics<parallel>], iteration_bounds = array<i64: 2>, scalar_prefetch = 0 : i64, scratch_operands = 0 : i64, tpu.core_type = #tpu.core_type<tc>, window_params = [{transform_indices = @transform_0, window_bounds = array<i64: 64, 128>}, {transform_indices = @transform_1, window_bounds = array<i64: 64, 128>}, {pipeline_mode = #tpu.pipeline_mode<synchronous>, transform_indices = @transform_2, window_bounds = array<i64: 128, 128>}, {pipeline_mode = #tpu.pipeline_mode<synchronous>, transform_indices = @transform_3, window_bounds = array<i64: 128, 128>}, {pipeline_mode = #tpu.pipeline_mode<synchronous>, transform_indices = @transform_4, window_bounds = array<i64: 8, 128>}, {transform_indices = @transform_5, window_bounds = array<i64: 64, 128>}]} {
    %c0 = arith.constant 0 : index
    %c0_0 = arith.constant 0 : index
    %0 = vector.load %arg5[%c0, %c0_0] : memref<8x128xf32, #tpu.memory_space<vmem>>, vector<8x128xf32>
    %1 = vector.extract_strided_slice %0 {offsets = [0, 0], sizes = [1, 128], strides = [1, 1]} : vector<8x128xf32> to vector<1x128xf32>
    %2 = vector.extract_strided_slice %0 {offsets = [1, 0], sizes = [1, 128], strides = [1, 1]} : vector<8x128xf32> to vector<1x128xf32>
    %3 = vector.extract_strided_slice %0 {offsets = [2, 0], sizes = [1, 128], strides = [1, 1]} : vector<8x128xf32> to vector<1x128xf32>
    %c0_1 = arith.constant 0 : index
    %c0_2 = arith.constant 0 : index
    %4 = vector.load %arg1[%c0_1, %c0_2] : memref<64x128xf32, #tpu.memory_space<vmem>>, vector<64x128xf32>
    %c0_3 = arith.constant 0 : index
    %c0_4 = arith.constant 0 : index
    %5 = vector.load %arg2[%c0_3, %c0_4] : memref<64x128xf32, #tpu.memory_space<vmem>>, vector<64x128xf32>
    %c0_5 = arith.constant 0 : index
    %c0_6 = arith.constant 0 : index
    %6 = vector.load %arg3[%c0_5, %c0_6] : memref<128x128xf32, #tpu.memory_space<vmem>>, vector<128x128xf32>
    %cst = arith.constant dense<0.000000e+00> : vector<64x128xf32>
    %7 = tpu.matmul %4, %6, %cst {dimension_numbers = #tpu.dot_dimension_numbers<[1], [0], [0], [1], [0, 0, 1, 1], [], []>} : vector<64x128xf32>, vector<128x128xf32>, vector<64x128xf32> -> vector<64x128xf32>
    %c0_7 = arith.constant 0 : index
    %c0_8 = arith.constant 0 : index
    %8 = vector.load %arg4[%c0_7, %c0_8] : memref<128x128xf32, #tpu.memory_space<vmem>>, vector<128x128xf32>
    %cst_9 = arith.constant dense<0.000000e+00> : vector<64x128xf32>
    %9 = tpu.matmul %5, %8, %cst_9 {dimension_numbers = #tpu.dot_dimension_numbers<[1], [0], [0], [1], [0, 0, 1, 1], [], []>} : vector<64x128xf32>, vector<128x128xf32>, vector<64x128xf32> -> vector<64x128xf32>
    %10 = arith.addf %7, %9 : vector<64x128xf32>
    %11 = vector.broadcast %1 : vector<1x128xf32> to vector<64x128xf32>
    %12 = arith.addf %10, %11 : vector<64x128xf32>
    %13 = arith.negf %12 : vector<64x128xf32>
    %14 = math.exp %13 : vector<64x128xf32>
    %cst_10 = arith.constant 1.000000e+00 : f32
    %15 = vector.broadcast %cst_10 : f32 to vector<64x128xf32>
    %16 = arith.addf %15, %14 : vector<64x128xf32>
    %17 = arith.divf %15, %16 : vector<64x128xf32>
    %18 = arith.subf %4, %5 : vector<64x128xf32>
    %19 = arith.mulf %17, %18 : vector<64x128xf32>
    %20 = arith.addf %5, %19 : vector<64x128xf32>
    %cst_11 = arith.constant dense<0.000000e+00> : vector<64xf32>
    %21 = vector.multi_reduction <add>, %20, %cst_11 [1] : vector<64x128xf32> to vector<64xf32>
    %22 = vector.shape_cast %21 : vector<64xf32> to vector<64x1xf32>
    %cst_12 = arith.constant 1.280000e+02 : f32
    %23 = vector.broadcast %cst_12 : f32 to vector<64x1xf32>
    %24 = arith.divf %22, %23 : vector<64x1xf32>
    %25 = vector.broadcast %24 : vector<64x1xf32> to vector<64x128xf32>
    %26 = arith.subf %20, %25 : vector<64x128xf32>
    %27 = arith.mulf %26, %26 : vector<64x128xf32>
    %cst_13 = arith.constant dense<0.000000e+00> : vector<64xf32>
    %28 = vector.multi_reduction <add>, %27, %cst_13 [1] : vector<64x128xf32> to vector<64xf32>
    %29 = vector.shape_cast %28 : vector<64xf32> to vector<64x1xf32>
    %cst_14 = arith.constant 1.280000e+02 : f32
    %30 = vector.broadcast %cst_14 : f32 to vector<64x1xf32>
    %31 = arith.divf %29, %30 : vector<64x1xf32>
    %cst_15 = arith.constant 9.99999974E-6 : f32
    %32 = vector.broadcast %cst_15 : f32 to vector<64x1xf32>
    %33 = arith.addf %31, %32 : vector<64x1xf32>
    %34 = math.rsqrt %33 : vector<64x1xf32>
    %35 = vector.broadcast %34 : vector<64x1xf32> to vector<64x128xf32>
    %36 = arith.mulf %26, %35 : vector<64x128xf32>
    %37 = vector.broadcast %2 : vector<1x128xf32> to vector<64x128xf32>
    %38 = arith.mulf %36, %37 : vector<64x128xf32>
    %39 = vector.broadcast %3 : vector<1x128xf32> to vector<64x128xf32>
    %40 = arith.addf %38, %39 : vector<64x128xf32>
    %c0_16 = arith.constant 0 : index
    %c0_17 = arith.constant 0 : index
    %41 = vector.load %arg6[%c0_16, %c0_17] : memref<64x128xf32, #tpu.memory_space<vmem>>, vector<64x128xf32>
    tpu.vector_store %arg6[%c0_16, %c0_17], %40 {strides = array<i32>} : memref<64x128xf32, #tpu.memory_space<vmem>>, vector<64x128xf32>,
    return
  }
  func.func @transform_0(%arg0: i32) -> (i32, i32) {
    %c0_i32 = arith.constant 0 : i32
    %c0_i32_0 = arith.constant 0 : i32
    return %arg0, %c0_i32 : i32, i32
  }
  func.func @transform_1(%arg0: i32) -> (i32, i32) {
    %c0_i32 = arith.constant 0 : i32
    %c0_i32_0 = arith.constant 0 : i32
    return %arg0, %c0_i32 : i32, i32
  }
  func.func @transform_2(%arg0: i32) -> (i32, i32) {
    %c0_i32 = arith.constant 0 : i32
    %c0_i32_0 = arith.constant 0 : i32
    %c0_i32_1 = arith.constant 0 : i32
    return %c0_i32, %c0_i32_0 : i32, i32
  }
  func.func @transform_3(%arg0: i32) -> (i32, i32) {
    %c0_i32 = arith.constant 0 : i32
    %c0_i32_0 = arith.constant 0 : i32
    %c0_i32_1 = arith.constant 0 : i32
    return %c0_i32, %c0_i32_0 : i32, i32
  }
  func.func @transform_4(%arg0: i32) -> (i32, i32) {
    %c0_i32 = arith.constant 0 : i32
    %c0_i32_0 = arith.constant 0 : i32
    %c0_i32_1 = arith.constant 0 : i32
    return %c0_i32, %c0_i32_0 : i32, i32
  }
  func.func @transform_5(%arg0: i32) -> (i32, i32) {
    %c0_i32 = arith.constant 0 : i32
    %c0_i32_0 = arith.constant 0 : i32
    return %arg0, %c0_i32 : i32, i32
  }
}

</mosaic_0001>

<llo_original>
// kernel: tpu_custom_call.1
$region0: #{tpu_custom_call.1}
  #allocation0 [shape = 'u32[]', space=smem, size = 0x4, offset = 0x4, fixed_abs, tag = 'smem constant byte address 0x4 - core index']
  #allocation1 [shape = 'u32[144,128]{1,0:T(1,128)}', space=vmem, size = 0x12000, scoped, tag = 'internal scratch']
  %s0 = inlined_call_operand.hbm [shape: f32[128,128], index: 0, kind: input, shape index: {}]
  %s1 = inlined_call_operand.hbm [shape: f32[128,128], index: 1, kind: input, shape index: {}]
  %s2 = inlined_call_operand.hbm [shape: f32[128,128], index: 2, kind: input, shape index: {}]
  %s3 = inlined_call_operand.hbm [shape: f32[128,128], index: 3, kind: input, shape index: {}]
  %s4 = inlined_call_operand.vmem [shape: f32[8,128], index: 4, kind: input, shape index: {}]
  %s5 = inlined_call_operand.hbm [shape: f32[128,128], index: 5, kind: output, shape index: {}]
  %s6 = sld [smem:[#allocation0]]
  $region69: #{tpu_custom_call.1} parent=0
    _
  %s8 = ssub.s32 1, %s6
  %s9 = scalar_select 0, %s8, %s6
  $region1: #{tpu_custom_call.1} parent=0
    #allocation2 [shape = 'u8[65536]{0}', space=vmem, size = 0x10000, scoped, tag = 'input window, operand 0']
    #allocation3 [shape = 's32[2]{0}', space=sflag, size = 0x8, scoped, tag = 'scoped memory for tpu_custom_call.1']
    #allocation4 [shape = 's32[2]{0}', space=sflag, size = 0x8, scoped, tag = 'scoped memory for tpu_custom_call.1']
    #allocation5 [shape = 'u8[65536]{0}', space=vmem, size = 0x10000, scoped, tag = 'input window, operand 1']
    #allocation6 [shape = 's32[2]{0}', space=sflag, size = 0x8, scoped, tag = 'scoped memory for tpu_custom_call.1']
    #allocation7 [shape = 'u8[65536]{0}', space=vmem, size = 0x10000, scoped, tag = 'input window, operand 2, single buffered']
    #allocation8 [shape = 'u8[65536]{0}', space=vmem, size = 0x10000, scoped, tag = 'input window, operand 3, single buffered']
    #allocation9 [shape = 's32[1]{0}', space=sflag, size = 0x4, scoped, tag = 'scoped memory for tpu_custom_call.1']
    #allocation10 [shape = 'u8[65536]{0}', space=vmem, size = 0x10000, scoped, tag = 'output window, operand 0']
    %10 = vsyncpa [#allocation3], 0
    %s11 = scalar_lea.sflag [#allocation3], 1
    %12 = vsyncpa %s11, 0
    %13 = vsyncpa [#allocation6], 0
    %s14 = scalar_lea.sflag [#allocation6], 1
    %15 = vsyncpa %s14, 0
    %16 = vsyncpa [#allocation9], 0
    %17 = vsyncpa [#allocation4], 0
    %s18 = scalar_lea.sflag [#allocation4], 1
    %19 = vsyncpa %s18, 0
    loop: start=0, step=1, limit=4
    $region2: #{tpu_custom_call.1} parent=1 // loop_pre_header
      _
    $region3: #{tpu_custom_call.1} parent=1 // loop_header
      %s21 = sphi 0, %s25
      %p22 = scmp.ge.s32.totalorder %s21, 4
      %s31 = sphi 0, %s33
      %s34 = sphi 0, %s31
      %s35 = sphi 0, %s34
      %s51 = sphi 0, %s35
      %s57 = sphi 0, %s59
      %s60 = sphi 0, %s57
      %s61 = sphi 0, %s60
      %s77 = sphi 0, %s61
      %s81 = sphi 0, %s81
      %s83 = sphi 0, %s81
      %s84 = sphi 0, %s83
      %s98 = sphi 0, %s84
      %s102 = sphi 0, %s102
      %s104 = sphi 0, %s102
      %s105 = sphi 0, %s104
      %s119 = sphi 0, %s105
      %s123 = sphi 0, %s123
      %s125 = sphi 0, %s123
      %s126 = sphi 0, %s125
      %s140 = sphi 0, %s126
      %s146 = sphi 0, %s148
      %s149 = sphi 0, %s146
      %s150 = sphi 0, %s149
      %s166 = sphi 0, %s150
    $region4: #{tpu_custom_call.1} parent=1 // loop_header_branch
      %24 = sbr.rel (%p22) target = $region8
    $region5: #{tpu_custom_call.1} parent=1 // loop_body
      %s26 = ssub.s32 %s21, 1
      %s27 = ssub.s32 %s21, 2
      %s28 = sadd.s32 %s21, 1
      %s29 = ssub.s32 %s21, %s28
      %p30 = scmp.eq.s32.totalorder %s29, 0
      %s32 = sadd.s32 %s31, 1
      %s33 = scalar_select %p30, %s31, %s32
      %p36 = pneg %p30
      %p37 = scmp.eq.s32.totalorder %s21, 1
      %p38 = por %p36, %p37
      %p39 = scmp.ne.s32.totalorder %s31, %s34
      %p40 = scmp.eq.s32.totalorder %s21, 0
      %p41 = por %p39, %p40
      %p42 = scmp.ne.s32.totalorder %s31, %s34
      %p43 = scmp.eq.s32.totalorder %s26, 1
      %p44 = por %p42, %p43
      %p45 = scmp.ne.s32.totalorder %s34, %s35
      %p46 = scmp.eq.s32.totalorder %s26, 0
      %p47 = por %p45, %p46
      %p48 = scmp.ne.s32.totalorder %s34, %s35
      %p49 = scmp.eq.s32.totalorder %s27, 1
      %p50 = por %p48, %p49
      %p52 = scmp.ne.s32.totalorder %s35, %s51
      %p53 = scmp.eq.s32.totalorder %s27, 0
      %p54 = por %p52, %p53
      %s55 = ssub.s32 %s21, %s28
      %p56 = scmp.eq.s32.totalorder %s55, 0
      %s58 = sadd.s32 %s57, 1
      %s59 = scalar_select %p56, %s57, %s58
      %p62 = pneg %p56
      %p63 = scmp.eq.s32.totalorder %s21, 1
      %p64 = por %p62, %p63
      %p65 = scmp.ne.s32.totalorder %s57, %s60
      %p66 = scmp.eq.s32.totalorder %s21, 0
      %p67 = por %p65, %p66
      %p68 = scmp.ne.s32.totalorder %s57, %s60
      %p69 = scmp.eq.s32.totalorder %s26, 1
      %p70 = por %p68, %p69
      %p71 = scmp.ne.s32.totalorder %s60, %s61
      %p72 = scmp.eq.s32.totalorder %s26, 0
      %p73 = por %p71, %p72
      %p74 = scmp.ne.s32.totalorder %s60, %s61
      %p75 = scmp.eq.s32.totalorder %s27, 1
      %p76 = por %p74, %p75
      %p78 = scmp.ne.s32.totalorder %s61, %s77
      %p79 = scmp.eq.s32.totalorder %s27, 0
      %p80 = por %p78, %p79
      %s82 = sadd.s32 %s81, 1
      %p85 = scmp.eq.s32.totalorder %s21, 1
      %p86 = scmp.ne.s32.totalorder %s81, %s83
      %p87 = scmp.eq.s32.totalorder %s21, 0
      %p88 = por %p86, %p87
      %p89 = scmp.ne.s32.totalorder %s81, %s83
      %p90 = scmp.eq.s32.totalorder %s26, 1
      %p91 = por %p89, %p90
      %p92 = scmp.ne.s32.totalorder %s83, %s84
      %p93 = scmp.eq.s32.totalorder %s26, 0
      %p94 = por %p92, %p93
      %p95 = scmp.ne.s32.totalorder %s83, %s84
      %p96 = scmp.eq.s32.totalorder %s27, 1
      %p97 = por %p95, %p96
      %p99 = scmp.ne.s32.totalorder %s84, %s98
      %p100 = scmp.eq.s32.totalorder %s27, 0
      %p101 = por %p99, %p100
      %s103 = sadd.s32 %s102, 1
      %p106 = scmp.eq.s32.totalorder %s21, 1
      %p107 = scmp.ne.s32.totalorder %s102, %s104
      %p108 = scmp.eq.s32.totalorder %s21, 0
      %p109 = por %p107, %p108
      %p110 = scmp.ne.s32.totalorder %s102, %s104
      %p111 = scmp.eq.s32.totalorder %s26, 1
      %p112 = por %p110, %p111
      %p113 = scmp.ne.s32.totalorder %s104, %s105
      %p114 = scmp.eq.s32.totalorder %s26, 0
      %p115 = por %p113, %p114
      %p116 = scmp.ne.s32.totalorder %s104, %s105
      %p117 = scmp.eq.s32.totalorder %s27, 1
      %p118 = por %p116, %p117
      %p120 = scmp.ne.s32.totalorder %s105, %s119
      %p121 = scmp.eq.s32.totalorder %s27, 0
      %p122 = por %p120, %p121
      %s124 = sadd.s32 %s123, 1
      %p127 = scmp.eq.s32.totalorder %s21, 1
      %p128 = scmp.ne.s32.totalorder %s123, %s125
      %p129 = scmp.eq.s32.totalorder %s21, 0
      %p130 = por %p128, %p129
      %p131 = scmp.ne.s32.totalorder %s123, %s125
      %p132 = scmp.eq.s32.totalorder %s26, 1
      %p133 = por %p131, %p132
      %p134 = scmp.ne.s32.totalorder %s125, %s126
      %p135 = scmp.eq.s32.totalorder %s26, 0
      %p136 = por %p134, %p135
      %p137 = scmp.ne.s32.totalorder %s125, %s126
      %p138 = scmp.eq.s32.totalorder %s27, 1
      %p139 = por %p137, %p138
      %p141 = scmp.ne.s32.totalorder %s126, %s140
      %p142 = scmp.eq.s32.totalorder %s27, 0
      %p143 = por %p141, %p142
      %s144 = ssub.s32 %s21, %s28
      %p145 = scmp.eq.s32.totalorder %s144, 0
      %s147 = sadd.s32 %s146, 1
      %s148 = scalar_select %p145, %s146, %s147
      %p151 = pneg %p145
      %p152 = scmp.eq.s32.totalorder %s21, 1
      %p153 = por %p151, %p152
      %p154 = scmp.ne.s32.totalorder %s146, %s149
      %p155 = scmp.eq.s32.totalorder %s21, 0
      %p156 = por %p154, %p155
      %p157 = scmp.ne.s32.totalorder %s146, %s149
      %p158 = scmp.eq.s32.totalorder %s26, 1
      %p159 = por %p157, %p158
      %p160 = scmp.ne.s32.totalorder %s149, %s150
      %p161 = scmp.eq.s32.totalorder %s26, 0
      %p162 = por %p160, %p161
      %p163 = scmp.ne.s32.totalorder %s149, %s150
      %p164 = scmp.eq.s32.totalorder %s27, 1
      %p165 = por %p163, %p164
      %p167 = scmp.ne.s32.totalorder %s150, %s166
      %p168 = scmp.eq.s32.totalorder %s27, 0
      %p169 = por %p167, %p168
      %p170 = scmp.le.s32.totalorder 1, %s21
      %p171 = scmp.lt.s32.totalorder %s21, 3
      %p172 = pnand %p170, %p171
      %p173 = pneg %p172
      // Predicated region
      $region9: #{tpu_custom_call.1} parent=5 // pred_check
        _
      $region10: #{tpu_custom_call.1} parent=5 // pred_check_branch
        %175 = sbr.rel (%p172) target = $region12
      $region11: #{tpu_custom_call.1} parent=5 // pred_region
        %s176 = ssub.s32 %s21, 1
        // Predicated region
        $region13: #{tpu_custom_call.1} parent=11 // pred_check
          %p177 = pneg %p94
        $region14: #{tpu_custom_call.1} parent=11 // pred_check_branch
          %179 = sbr.rel (%p177) target = $region16
        $region15: #{tpu_custom_call.1} parent=11 // pred_region
          %s181 = ssub.s32 2048, 2048
          %182 = vsyncadd [#allocation6], %s181
          %s183 = sshll.u32 [#allocation7], 4
          %s184 = int_to_ptr.vmem [resolvable:$true] %s183
          %189 = dma.hbm_to_vmem [thread:$0]  %s2, 2048, %s184, [#allocation6], 128, 128, 8
        $region16: #{tpu_custom_call.1} parent=11 // pred_fallthru
          _
        // Predicated region
        $region17: #{tpu_custom_call.1} parent=11 // pred_check
          %p190 = pneg %p115
        $region18: #{tpu_custom_call.1} parent=11 // pred_check_branch
          %192 = sbr.rel (%p190) target = $region20
        $region19: #{tpu_custom_call.1} parent=11 // pred_region
          %s194 = ssub.s32 2048, 2048
          %195 = vsyncadd [#allocation9], %s194
          %s196 = sshll.u32 [#allocation8], 4
          %s197 = int_to_ptr.vmem [resolvable:$true] %s196
          %202 = dma.hbm_to_vmem [thread:$0]  %s3, 2048, %s197, [#allocation9], 128, 128, 8
        $region20: #{tpu_custom_call.1} parent=11 // pred_fallthru
          _
        // Predicated region
        $region21: #{tpu_custom_call.1} parent=11 // pred_check
          %p203 = pneg %p136
        $region22: #{tpu_custom_call.1} parent=11 // pred_check_branch
          %205 = sbr.rel (%p203) target = $region24
        $region23: #{tpu_custom_call.1} parent=11 // pred_region
          _
        $region24: #{tpu_custom_call.1} parent=11 // pred_fallthru
          _
      $region12: #{tpu_custom_call.1} parent=5 // pred_fallthru
        _
      %p206 = scmp.lt.s32.totalorder %s21, 2
      // Predicated region
      $region25: #{tpu_custom_call.1} parent=5 // pred_check
        %p207 = pneg %p206
      $region26: #{tpu_custom_call.1} parent=5 // pred_check_branch
        %209 = sbr.rel (%p207) target = $region28
      $region27: #{tpu_custom_call.1} parent=5 // pred_region
        // Predicated region
        $region29: #{tpu_custom_call.1} parent=27 // pred_check
          %p210 = pneg %p41
        $region30: #{tpu_custom_call.1} parent=27 // pred_check_branch
          %212 = sbr.rel (%p210) target = $region32
        $region31: #{tpu_custom_call.1} parent=27 // pred_region
          %s213 = sand.u32 %s31, 1
          %s214 = scalar_lea.sflag [#allocation3], %s213
          %s215 = sand.u32 %s31, 1
          %s216 = smul.addr %s215, 64
          %s217 = scalar_lea.vmem [#allocation2], %s216
          %s218 = smul.u32 8, %s21
          %s220 = ssub.s32 1024, 1024
          %221 = vsyncadd %s214, %s220
          %s222 = smul.addr %s218, 128
          %s223 = scalar_lea.hbm %s0, %s222
          %s224 = sshll.u32 %s217, 4
          %s225 = int_to_ptr.vmem [resolvable:$true] %s224
          %230 = dma.hbm_to_vmem [thread:$0]  %s223, 1024, %s225, %s214, 128, 128, 8
        $region32: #{tpu_custom_call.1} parent=27 // pred_fallthru
          _
        // Predicated region
        $region33: #{tpu_custom_call.1} parent=27 // pred_check
          %p231 = pneg %p67
        $region34: #{tpu_custom_call.1} parent=27 // pred_check_branch
          %233 = sbr.rel (%p231) target = $region36
        $region35: #{tpu_custom_call.1} parent=27 // pred_region
          %s234 = sand.u32 %s21, 1
          %s235 = scalar_lea.sflag [#allocation6], %s234
          %s236 = sand.u32 %s57, 1
          %s237 = smul.addr %s236, 64
          %s238 = scalar_lea.vmem [#allocation5], %s237
          %s239 = smul.u32 8, %s21
          %s241 = ssub.s32 1024, 1024
          %242 = vsyncadd %s235, %s241
          %s243 = smul.addr %s239, 128
          %s244 = scalar_lea.hbm %s1, %s243
          %s245 = sshll.u32 %s238, 4
          %s246 = int_to_ptr.vmem [resolvable:$true] %s245
          %251 = dma.hbm_to_vmem [thread:$0]  %s244, 1024, %s246, %s235, 128, 128, 8
        $region36: #{tpu_custom_call.1} parent=27 // pred_fallthru
          _
      $region28: #{tpu_custom_call.1} parent=5 // pred_fallthru
        _
      %p252 = scmp.le.s32.totalorder 1, %s21
      %p253 = scmp.lt.s32.totalorder %s21, 3
      %p254 = pnand %p252, %p253
      %p255 = pneg %p254
      // Predicated region
      $region37: #{tpu_custom_call.1} parent=5 // pred_check
        _
      $region38: #{tpu_custom_call.1} parent=5 // pred_check_branch
        %257 = sbr.rel (%p254) target = $region40
      $region39: #{tpu_custom_call.1} parent=5 // pred_region
        %s258 = ssub.s32 %s21, 1
        %s259 = sand.u32 %s34, 1
        %s260 = scalar_lea.sflag [#allocation3], %s259
        %s261 = sand.u32 %s34, 1
        %s262 = smul.addr %s261, 64
        %s263 = scalar_lea.vmem [#allocation2], %s262
        // Predicated region
        $region41: #{tpu_custom_call.1} parent=39 // pred_check
          %p264 = pneg %p47
        $region42: #{tpu_custom_call.1} parent=39 // pred_check_branch
          %266 = sbr.rel (%p264) target = $region44
        $region43: #{tpu_custom_call.1} parent=39 // pred_region
          %267 = dma.done %s260, 1024
        $region44: #{tpu_custom_call.1} parent=39 // pred_fallthru
          _
        %s268 = sand.u32 %s26, 1
        %s269 = scalar_lea.sflag [#allocation6], %s268
        %s270 = sand.u32 %s60, 1
        %s271 = smul.addr %s270, 64
        %s272 = scalar_lea.vmem [#allocation5], %s271
        // Predicated region
        $region45: #{tpu_custom_call.1} parent=39 // pred_check
          %p273 = pneg %p73
        $region46: #{tpu_custom_call.1} parent=39 // pred_check_branch
          %275 = sbr.rel (%p273) target = $region48
        $region47: #{tpu_custom_call.1} parent=39 // pred_region
          %276 = dma.done %s269, 1024
        $region48: #{tpu_custom_call.1} parent=39 // pred_fallthru
          _
        // Predicated region
        $region49: #{tpu_custom_call.1} parent=39 // pred_check
          %p277 = pneg %p94
        $region50: #{tpu_custom_call.1} parent=39 // pred_check_branch
          %279 = sbr.rel (%p277) target = $region52
        $region51: #{tpu_custom_call.1} parent=39 // pred_region
          %280 = dma.done [#allocation6], 2048
        $region52: #{tpu_custom_call.1} parent=39 // pred_fallthru
          _
        // Predicated region
        $region53: #{tpu_custom_call.1} parent=39 // pred_check
          %p281 = pneg %p115
        $region54: #{tpu_custom_call.1} parent=39 // pred_check_branch
          %283 = sbr.rel (%p281) target = $region56
        $region55: #{tpu_custom_call.1} parent=39 // pred_region
          %284 = dma.done [#allocation9], 2048
        $region56: #{tpu_custom_call.1} parent=39 // pred_fallthru
          _
        %s285 = sand.u32 %s34, 1
        %s286 = scalar_lea.sflag [#allocation3], %s285
        %s287 = sand.u32 %s34, 1
        %s288 = smul.addr %s287, 64
        %s289 = scalar_lea.vmem [#allocation2], %s288
        %p290 = pneg %p47
        %p291 = pneg %p44
        %s292 = sand.u32 %s26, 1
        %s293 = scalar_lea.sflag [#allocation6], %s292
        %s294 = sand.u32 %s60, 1
        %s295 = smul.addr %s294, 64
        %s296 = scalar_lea.vmem [#allocation5], %s295
        %p297 = pneg %p73
        %p298 = pneg %p70
        %p299 = pneg %p94
        %p300 = pneg %p91
        %p301 = pneg %p115
        %p302 = pneg %p112
        %p303 = pneg %p136
        %p304 = pneg %p133
        %p305 = pneg %p162
        %p306 = pneg %p159
        %s307 = sand.u32 %s149, 1
        %s308 = scalar_lea.sflag [#allocation4], %s307
        %s309 = sand.u32 %s149, 1
        %s310 = smul.addr %s309, 64
        %s311 = scalar_lea.vmem [#allocation10], %s310
        %s312 = smul.u32 8, %s26
        %s313 = smul.u32 8, %s26
        %s314 = smul.u32 8, %s26
        %v315 = vld [vmem:[%s4] sm:$0xff]
        %v316 = vld [vmem:[%s263] sm:$0xff]
        %v317 = vld [vmem:[%s263 + $0x8] sm:$0xff]
        %v318 = vld [vmem:[%s263 + $0x10] sm:$0xff]
        %v319 = vld [vmem:[%s263 + $0x18] sm:$0xff]
        %v320 = vld [vmem:[%s263 + $0x20] sm:$0xff]
        %v321 = vld [vmem:[%s263 + $0x28] sm:$0xff]
        %v322 = vld [vmem:[%s263 + $0x30] sm:$0xff]
        %v323 = vld [vmem:[%s263 + $0x38] sm:$0xff]
        %v324 = vld [vmem:[%s272] sm:$0xff]
        %v325 = vld [vmem:[%s272 + $0x8] sm:$0xff]
        %v326 = vld [vmem:[%s272 + $0x10] sm:$0xff]
        %v327 = vld [vmem:[%s272 + $0x18] sm:$0xff]
        %v328 = vld [vmem:[%s272 + $0x20] sm:$0xff]
        %v329 = vld [vmem:[%s272 + $0x28] sm:$0xff]
        %v330 = vld [vmem:[%s272 + $0x30] sm:$0xff]
        %v331 = vld [vmem:[%s272 + $0x38] sm:$0xff]
        %v332 = vld [vmem:[#allocation7] sm:$0xff]
        %v333 = vld [vmem:[#allocation7 + $0x8] sm:$0xff]
        %v334 = vld [vmem:[#allocation7 + $0x10] sm:$0xff]
        %v335 = vld [vmem:[#allocation7 + $0x18] sm:$0xff]
        %v336 = vld [vmem:[#allocation7 + $0x20] sm:$0xff]
        %v337 = vld [vmem:[#allocation7 + $0x28] sm:$0xff]
        %v338 = vld [vmem:[#allocation7 + $0x30] sm:$0xff]
        %v339 = vld [vmem:[#allocation7 + $0x38] sm:$0xff]
        %v340 = vld [vmem:[#allocation7 + $0x40] sm:$0xff]
        %v341 = vld [vmem:[#allocation7 + $0x48] sm:$0xff]
        %v342 = vld [vmem:[#allocation7 + $0x50] sm:$0xff]
        %v343 = vld [vmem:[#allocation7 + $0x58] sm:$0xff]
        %v344 = vld [vmem:[#allocation7 + $0x60] sm:$0xff]
        %v345 = vld [vmem:[#allocation7 + $0x68] sm:$0xff]
        %v346 = vld [vmem:[#allocation7 + $0x70] sm:$0xff]
        %v347 = vld [vmem:[#allocation7 + $0x78] sm:$0xff]
        %v348 = vld [vmem:[#allocation8] sm:$0xff]
        %v349 = vld [vmem:[#allocation8 + $0x8] sm:$0xff]
        %v350 = vld [vmem:[#allocation8 + $0x10] sm:$0xff]
        %v351 = vld [vmem:[#allocation8 + $0x18] sm:$0xff]
        %v352 = vld [vmem:[#allocation8 + $0x20] sm:$0xff]
        %v353 = vld [vmem:[#allocation8 + $0x28] sm:$0xff]
        %v354 = vld [vmem:[#allocation8 + $0x30] sm:$0xff]
        %v355 = vld [vmem:[#allocation8 + $0x38] sm:$0xff]
        %v356 = vld [vmem:[#allocation8 + $0x40] sm:$0xff]
        %v357 = vld [vmem:[#allocation8 + $0x48] sm:$0xff]
        %v358 = vld [vmem:[#allocation8 + $0x50] sm:$0xff]
        %v359 = vld [vmem:[#allocation8 + $0x58] sm:$0xff]
        %v360 = vld [vmem:[#allocation8 + $0x60] sm:$0xff]
        %v361 = vld [vmem:[#allocation8 + $0x68] sm:$0xff]
        %v362 = vld [vmem:[#allocation8 + $0x70] sm:$0xff]
        %v363 = vld [vmem:[#allocation8 + $0x78] sm:$0xff]
        %364 = vmatprep.subr.mxu0 0.0
        %365 = vmatpush1.msra.mxu0 %v348
        %366 = vmatprep.subr.mxu0 0.0
        %367 = vmatpush1.msra.mxu0 %v349
        %368 = vmatprep.subr.mxu0 0.0
        %369 = vmatpush1.msra.mxu0 %v350
        %370 = vmatprep.subr.mxu0 0.0
        %371 = vmatpush1.msra.mxu0 %v351
        %372 = vmatprep.subr.mxu0 0.0
        %373 = vmatpush1.msra.mxu0 %v352
        %374 = vmatprep.subr.mxu0 0.0
        %375 = vmatpush1.msra.mxu0 %v353
        %376 = vmatprep.subr.mxu0 0.0
        %377 = vmatpush1.msra.mxu0 %v354
        %378 = vmatprep.subr.mxu0 0.0
        %379 = vmatpush1.msra.mxu0 %v355
        %380 = vmatprep.subr.mxu0 0.0
        %381 = vmatpush1.msra.mxu0 %v356
        %382 = vmatprep.subr.mxu0 0.0
        %383 = vmatpush1.msra.mxu0 %v357
        %384 = vmatprep.subr.mxu0 0.0
        %385 = vmatpush1.msra.mxu0 %v358
        %386 = vmatprep.subr.mxu0 0.0
        %387 = vmatpush1.msra.mxu0 %v359
        %388 = vmatprep.subr.mxu0 0.0
        %389 = vmatpush1.msra.mxu0 %v360
        %390 = vmatprep.subr.mxu0 0.0
        %391 = vmatpush1.msra.mxu0 %v361
        %392 = vmatprep.subr.mxu0 0.0
        %393 = vmatpush1.msra.mxu0 %v362
        %394 = vmatprep.subr.mxu0 0.0
        %395 = vmatpush1.msra.mxu0 %v363
        %396 = vmatprep.subr.mxu0 0.0
        %397 = vmatpush1.msra.mxu0 0.0
        %398 = vmatprep.subr.mxu0 0.0
        %399 = vmatpush1.msra.mxu0 0.0
        %400 = vmatprep.subr.mxu0 0.0
        %401 = vmatpush1.msra.mxu0 0.0
        %402 = vmatprep.subr.mxu0 0.0
        %403 = vmatpush1.msra.mxu0 0.0
        %404 = vmatprep.subr.mxu0 0.0
        %405 = vmatpush1.msra.mxu0 0.0
        %406 = vmatprep.subr.mxu0 0.0
        %407 = vmatpush1.msra.mxu0 0.0
        %408 = vmatprep.subr.mxu0 0.0
        %409 = vmatpush1.msra.mxu0 0.0
        %410 = vmatprep.subr.mxu0 0.0
        %411 = vmatpush1.msra.mxu0 0.0
        %412 = vmatprep.subr.mxu0 0.0
        %413 = vmatpush1.msra.mxu0 0.0
        %414 = vmatprep.subr.mxu0 0.0
        %415 = vmatpush1.msra.mxu0 0.0
        %416 = vmatprep.subr.mxu0 0.0
        %417 = vmatpush1.msra.mxu0 0.0
        %418 = vmatprep.subr.mxu0 0.0
        %419 = vmatpush1.msra.mxu0 0.0
        %420 = vmatprep.subr.mxu0 0.0
        %421 = vmatpush1.msra.mxu0 0.0
        %422 = vmatprep.subr.mxu0 0.0
        %423 = vmatpush1.msra.mxu0 0.0
        %424 = vmatprep.subr.mxu0 0.0
        %425 = vmatpush1.msra.mxu0 0.0
        %426 = vmatprep.subr.mxu0 0.0
        %427 = vmatpush1.msra.mxu0 0.0
        %428 = vmatprep.mubr.f32.mxu0 0.0
        %429 = vmatmul.mubr.f32.gmra.mrb[0].mxu0 %v324
        %v430 = vpop.f32.mrb[0].mxu0
        %v431 = vadd.f32 0.0, %v430
        %v432 = vpop.f32.mrb[0].mxu0
        %433 = vmatprep.mubr.f32.mxu0 0.0
        %434 = vmatmul.mubr.f32.gmra.mrb[0].mxu0 %v325
        %v435 = vpop.f32.mrb[0].mxu0
        %v436 = vadd.f32 0.0, %v435
        %v437 = vpop.f32.mrb[0].mxu0
        %438 = vmatprep.mubr.f32.mxu0 0.0
        %439 = vmatmul.mubr.f32.gmra.mrb[0].mxu0 %v326
        %v440 = vpop.f32.mrb[0].mxu0
        %v441 = vadd.f32 0.0, %v440
        %v442 = vpop.f32.mrb[0].mxu0
        %443 = vmatprep.mubr.f32.mxu0 0.0
        %444 = vmatmul.mubr.f32.gmra.mrb[0].mxu0 %v327
        %v445 = vpop.f32.mrb[0].mxu0
        %v446 = vadd.f32 0.0, %v445
        %v447 = vpop.f32.mrb[0].mxu0
        %448 = vmatprep.mubr.f32.mxu0 0.0
        %449 = vmatmul.mubr.f32.gmra.mrb[0].mxu0 %v328
        %v450 = vpop.f32.mrb[0].mxu0
        %v451 = vadd.f32 0.0, %v450
        %v452 = vpop.f32.mrb[0].mxu0
        %453 = vmatprep.mubr.f32.mxu0 0.0
        %454 = vmatmul.mubr.f32.gmra.mrb[0].mxu0 %v329
        %v455 = vpop.f32.mrb[0].mxu0
        %v456 = vadd.f32 0.0, %v455
        %v457 = vpop.f32.mrb[0].mxu0
        %458 = vmatprep.mubr.f32.mxu0 0.0
        %459 = vmatmul.mubr.f32.gmra.mrb[0].mxu0 %v330
        %v460 = vpop.f32.mrb[0].mxu0
        %v461 = vadd.f32 0.0, %v460
        %v462 = vpop.f32.mrb[0].mxu0
        %463 = vmatprep.mubr.f32.mxu0 0.0
        %464 = vmatmul.mubr.f32.gmra.mrb[0].mxu0 %v331
        %v465 = vpop.f32.mrb[0].mxu0
        %v466 = vadd.f32 0.0, %v465
        %v467 = vpop.f32.mrb[0].mxu0
        %468 = vdwg.mxu0
        %469 = vmatprep.subr.mxu0 0.0
        %470 = vmatpush1.msra.mxu0 %v332
        %471 = vmatprep.subr.mxu0 0.0
        %472 = vmatpush1.msra.mxu0 %v333
        %473 = vmatprep.subr.mxu0 0.0
        %474 = vmatpush1.msra.mxu0 %v334
        %475 = vmatprep.subr.mxu0 0.0
        %476 = vmatpush1.msra.mxu0 %v335
        %477 = vmatprep.subr.mxu0 0.0
        %478 = vmatpush1.msra.mxu0 %v336
        %479 = vmatprep.subr.mxu0 0.0
        %480 = vmatpush1.msra.mxu0 %v337
        %481 = vmatprep.subr.mxu0 0.0
        %482 = vmatpush1.msra.mxu0 %v338
        %483 = vmatprep.subr.mxu0 0.0
        %484 = vmatpush1.msra.mxu0 %v339
        %485 = vmatprep.subr.mxu0 0.0
        %486 = vmatpush1.msra.mxu0 %v340
        %487 = vmatprep.subr.mxu0 0.0
        %488 = vmatpush1.msra.mxu0 %v341
        %489 = vmatprep.subr.mxu0 0.0
        %490 = vmatpush1.msra.mxu0 %v342
        %491 = vmatprep.subr.mxu0 0.0
        %492 = vmatpush1.msra.mxu0 %v343
        %493 = vmatprep.subr.mxu0 0.0
        %494 = vmatpush1.msra.mxu0 %v344
        %495 = vmatprep.subr.mxu0 0.0
        %496 = vmatpush1.msra.mxu0 %v345
        %497 = vmatprep.subr.mxu0 0.0
        %498 = vmatpush1.msra.mxu0 %v346
        %499 = vmatprep.subr.mxu0 0.0
        %500 = vmatpush1.msra.mxu0 %v347
        %501 = vmatprep.subr.mxu0 0.0
        %502 = vmatpush1.msra.mxu0 0.0
        %503 = vmatprep.subr.mxu0 0.0
        %504 = vmatpush1.msra.mxu0 0.0
        %505 = vmatprep.subr.mxu0 0.0
        %506 = vmatpush1.msra.mxu0 0.0
        %507 = vmatprep.subr.mxu0 0.0
        %508 = vmatpush1.msra.mxu0 0.0
        %509 = vmatprep.subr.mxu0 0.0
        %510 = vmatpush1.msra.mxu0 0.0
        %511 = vmatprep.subr.mxu0 0.0
        %512 = vmatpush1.msra.mxu0 0.0
        %513 = vmatprep.subr.mxu0 0.0
        %514 = vmatpush1.msra.mxu0 0.0
        %515 = vmatprep.subr.mxu0 0.0
        %516 = vmatpush1.msra.mxu0 0.0
        %517 = vmatprep.subr.mxu0 0.0
        %518 = vmatpush1.msra.mxu0 0.0
        %519 = vmatprep.subr.mxu0 0.0
        %520 = vmatpush1.msra.mxu0 0.0
        %521 = vmatprep.subr.mxu0 0.0
        %522 = vmatpush1.msra.mxu0 0.0
        %523 = vmatprep.subr.mxu0 0.0
        %524 = vmatpush1.msra.mxu0 0.0
        %525 = vmatprep.subr.mxu0 0.0
        %526 = vmatpush1.msra.mxu0 0.0
        %527 = vmatprep.subr.mxu0 0.0
        %528 = vmatpush1.msra.mxu0 0.0
        %529 = vmatprep.subr.mxu0 0.0
        %530 = vmatpush1.msra.mxu0 0.0
        %531 = vmatprep.subr.mxu0 0.0
        %532 = vmatpush1.msra.mxu0 0.0
        %533 = vmatprep.mubr.f32.mxu0 0.0
        %534 = vmatmul.mubr.f32.gmra.mrb[0].mxu0 %v316
        %v535 = vpop.f32.mrb[0].mxu0
        %v536 = vadd.f32 %v431, %v535
        %v537 = vpop.f32.mrb[0].mxu0
        %538 = vmatprep.mubr.f32.mxu0 0.0
        %539 = vmatmul.mubr.f32.gmra.mrb[0].mxu0 %v317
        %v540 = vpop.f32.mrb[0].mxu0
        %v541 = vadd.f32 %v436, %v540
        %v542 = vpop.f32.mrb[0].mxu0
        %543 = vmatprep.mubr.f32.mxu0 0.0
        %544 = vmatmul.mubr.f32.gmra.mrb[0].mxu0 %v318
        %v545 = vpop.f32.mrb[0].mxu0
        %v546 = vadd.f32 %v441, %v545
        %v547 = vpop.f32.mrb[0].mxu0
        %548 = vmatprep.mubr.f32.mxu0 0.0
        %549 = vmatmul.mubr.f32.gmra.mrb[0].mxu0 %v319
        %v550 = vpop.f32.mrb[0].mxu0
        %v551 = vadd.f32 %v446, %v550
        %v552 = vpop.f32.mrb[0].mxu0
        %553 = vmatprep.mubr.f32.mxu0 0.0
        %554 = vmatmul.mubr.f32.gmra.mrb[0].mxu0 %v320
        %v555 = vpop.f32.mrb[0].mxu0
        %v556 = vadd.f32 %v451, %v555
        %v557 = vpop.f32.mrb[0].mxu0
        %558 = vmatprep.mubr.f32.mxu0 0.0
        %559 = vmatmul.mubr.f32.gmra.mrb[0].mxu0 %v321
        %v560 = vpop.f32.mrb[0].mxu0
        %v561 = vadd.f32 %v456, %v560
        %v562 = vpop.f32.mrb[0].mxu0
        %563 = vmatprep.mubr.f32.mxu0 0.0
        %564 = vmatmul.mubr.f32.gmra.mrb[0].mxu0 %v322
        %v565 = vpop.f32.mrb[0].mxu0
        %v566 = vadd.f32 %v461, %v565
        %v567 = vpop.f32.mrb[0].mxu0
        %568 = vmatprep.mubr.f32.mxu0 0.0
        %569 = vmatmul.mubr.f32.gmra.mrb[0].mxu0 %v323
        %v570 = vpop.f32.mrb[0].mxu0
        %v571 = vadd.f32 %v466, %v570
        %v572 = vpop.f32.mrb[0].mxu0
        %573 = vdwg.mxu0
        %v574 = vlaneseq
        %v575 = vshrl.u32 %v574, 7
        %v576 = vsub.s32 0, %v575
        %v577 = vrot.slane %v315, %v576
        %v578 = vadd.f32 %v536, %v577
        %v579 = vadd.f32 %v541, %v577
        %v580 = vadd.f32 %v546, %v577
        %v581 = vadd.f32 %v551, %v577
        %v582 = vadd.f32 %v556, %v577
        %v583 = vadd.f32 %v561, %v577
        %v584 = vadd.f32 %v566, %v577
        %v585 = vadd.f32 %v571, %v577
        %v586 = vxor.u32 %v578, 2147483648
        %v587 = vxor.u32 %v579, 2147483648
        %v588 = vxor.u32 %v580, 2147483648
        %v589 = vxor.u32 %v581, 2147483648
        %v590 = vxor.u32 %v582, 2147483648
        %v591 = vxor.u32 %v583, 2147483648
        %v592 = vxor.u32 %v584, 2147483648
        %v593 = vxor.u32 %v585, 2147483648
        %v594 = vmul.f32 %v586, 1.442695
        %v595 = vpow.pop %v594
        %v596 = vmul.f32 %v587, 1.442695
        %v597 = vpow.pop %v596
        %v598 = vmul.f32 %v588, 1.442695
        %v599 = vpow.pop %v598
        %v600 = vmul.f32 %v589, 1.442695
        %v601 = vpow.pop %v600
        %v602 = vmul.f32 %v590, 1.442695
        %v603 = vpow.pop %v602
        %v604 = vmul.f32 %v591, 1.442695
        %v605 = vpow.pop %v604
        %v606 = vmul.f32 %v592, 1.442695
        %v607 = vpow.pop %v606
        %v608 = vmul.f32 %v593, 1.442695
        %v609 = vpow.pop %v608
        %v610 = vadd.f32 %v595, 1.0
        %v611 = vadd.f32 %v597, 1.0
        %v612 = vadd.f32 %v599, 1.0
        %v613 = vadd.f32 %v601, 1.0
        %v614 = vadd.f32 %v603, 1.0
        %v615 = vadd.f32 %v605, 1.0
        %v616 = vadd.f32 %v607, 1.0
        %v617 = vadd.f32 %v609, 1.0
        %v618 = vrcp.pop %v610
        %v619 = vmul.f32 1.0, %v618
        %v620 = vrcp.pop %v611
        %v621 = vmul.f32 1.0, %v620
        %v622 = vrcp.pop %v612
        %v623 = vmul.f32 1.0, %v622
        %v624 = vrcp.pop %v613
        %v625 = vmul.f32 1.0, %v624
        %v626 = vrcp.pop %v614
        %v627 = vmul.f32 1.0, %v626
        %v628 = vrcp.pop %v615
        %v629 = vmul.f32 1.0, %v628
        %v630 = vrcp.pop %v616
        %v631 = vmul.f32 1.0, %v630
        %v632 = vrcp.pop %v617
        %v633 = vmul.f32 1.0, %v632
        %v634 = vsub.f32 %v316, %v324
        %v635 = vsub.f32 %v317, %v325
        %v636 = vsub.f32 %v318, %v326
        %v637 = vsub.f32 %v319, %v327
        %v638 = vsub.f32 %v320, %v328
        %v639 = vsub.f32 %v321, %v329
        %v640 = vsub.f32 %v322, %v330
        %v641 = vsub.f32 %v323, %v331
        %v642 = vmul.f32 %v619, %v634
        %v643 = vmul.f32 %v621, %v635
        %v644 = vmul.f32 %v623, %v636
        %v645 = vmul.f32 %v625, %v637
        %v646 = vmul.f32 %v627, %v638
        %v647 = vmul.f32 %v629, %v639
        %v648 = vmul.f32 %v631, %v640
        %v649 = vmul.f32 %v633, %v641
        %v650 = vadd.f32 %v324, %v642
        %v651 = vadd.f32 %v325, %v643
        %v652 = vadd.f32 %v326, %v644
        %v653 = vadd.f32 %v327, %v645
        %v654 = vadd.f32 %v328, %v646
        %v655 = vadd.f32 %v329, %v647
        %v656 = vadd.f32 %v330, %v648
        %v657 = vadd.f32 %v331, %v649
        %658 = vadd.xlane.f32.xlu0 %v650
        %v659 = vpop.xlane.xlu0 %658
        %660 = vadd.xlane.f32.xlu0 %v651
        %v661 = vpop.xlane.xlu0 %660
        %662 = vadd.xlane.f32.xlu0 %v652
        %v663 = vpop.xlane.xlu0 %662
        %664 = vadd.xlane.f32.xlu0 %v653
        %v665 = vpop.xlane.xlu0 %664
        %666 = vadd.xlane.f32.xlu0 %v654
        %v667 = vpop.xlane.xlu0 %666
        %668 = vadd.xlane.f32.xlu0 %v655
        %v669 = vpop.xlane.xlu0 %668
        %670 = vadd.xlane.f32.xlu0 %v656
        %v671 = vpop.xlane.xlu0 %670
        %672 = vadd.xlane.f32.xlu0 %v657
        %v673 = vpop.xlane.xlu0 %672
        %v674 = vrcp.pop 128.0
        %v675 = vmul.f32 %v659, %v674
        %v676 = vmul.f32 %v661, %v674
        %v677 = vmul.f32 %v663, %v674
        %v678 = vmul.f32 %v665, %v674
        %v679 = vmul.f32 %v667, %v674
        %v680 = vmul.f32 %v669, %v674
        %v681 = vmul.f32 %v671, %v674
        %v682 = vmul.f32 %v673, %v674
        %v683 = vsub.f32 %v650, %v675
        %v684 = vsub.f32 %v651, %v676
        %v685 = vsub.f32 %v652, %v677
        %v686 = vsub.f32 %v653, %v678
        %v687 = vsub.f32 %v654, %v679
        %v688 = vsub.f32 %v655, %v680
        %v689 = vsub.f32 %v656, %v681
        %v690 = vsub.f32 %v657, %v682
        %v691 = vmul.f32 %v683, %v683
        %v692 = vmul.f32 %v684, %v684
        %v693 = vmul.f32 %v685, %v685
        %v694 = vmul.f32 %v686, %v686
        %v695 = vmul.f32 %v687, %v687
        %v696 = vmul.f32 %v688, %v688
        %v697 = vmul.f32 %v689, %v689
        %v698 = vmul.f32 %v690, %v690
        %699 = vadd.xlane.f32.xlu0 %v691
        %v700 = vpop.xlane.xlu0 %699
        %701 = vadd.xlane.f32.xlu0 %v692
        %v702 = vpop.xlane.xlu0 %701
        %703 = vadd.xlane.f32.xlu0 %v693
        %v704 = vpop.xlane.xlu0 %703
        %705 = vadd.xlane.f32.xlu0 %v694
        %v706 = vpop.xlane.xlu0 %705
        %707 = vadd.xlane.f32.xlu0 %v695
        %v708 = vpop.xlane.xlu0 %707
        %709 = vadd.xlane.f32.xlu0 %v696
        %v710 = vpop.xlane.xlu0 %709
        %711 = vadd.xlane.f32.xlu0 %v697
        %v712 = vpop.xlane.xlu0 %711
        %713 = vadd.xlane.f32.xlu0 %v698
        %v714 = vpop.xlane.xlu0 %713
        %v715 = vmul.f32 %v700, %v674
        %v716 = vmul.f32 %v702, %v674
        %v717 = vmul.f32 %v704, %v674
        %v718 = vmul.f32 %v706, %v674
        %v719 = vmul.f32 %v708, %v674
        %v720 = vmul.f32 %v710, %v674
        %v721 = vmul.f32 %v712, %v674
        %v722 = vmul.f32 %v714, %v674
        %v723 = vadd.f32 %v715, 1e-05
        %v724 = vadd.f32 %v716, 1e-05
        %v725 = vadd.f32 %v717, 1e-05
        %v726 = vadd.f32 %v718, 1e-05
        %v727 = vadd.f32 %v719, 1e-05
        %v728 = vadd.f32 %v720, 1e-05
        %v729 = vadd.f32 %v721, 1e-05
        %v730 = vadd.f32 %v722, 1e-05
        %v731 = vrsqrt.pop %v723
        %v732 = vrsqrt.pop %v724
        %v733 = vrsqrt.pop %v725
        %v734 = vrsqrt.pop %v726
        %v735 = vrsqrt.pop %v727
        %v736 = vrsqrt.pop %v728
        %v737 = vrsqrt.pop %v729
        %v738 = vrsqrt.pop %v730
        %v739 = vmul.f32 %v683, %v731
        %v740 = vmul.f32 %v684, %v732
        %v741 = vmul.f32 %v685, %v733
        %v742 = vmul.f32 %v686, %v734
        %v743 = vmul.f32 %v687, %v735
        %v744 = vmul.f32 %v688, %v736
        %v745 = vmul.f32 %v689, %v737
        %v746 = vmul.f32 %v690, %v738
        %v747 = vlaneseq
        %v748 = vshrl.u32 %v747, 7
        %v749 = vsub.s32 1, %v748
        %v750 = vrot.slane %v315, %v749
        %v751 = vmul.f32 %v739, %v750
        %v752 = vmul.f32 %v740, %v750
        %v753 = vmul.f32 %v741, %v750
        %v754 = vmul.f32 %v742, %v750
        %v755 = vmul.f32 %v743, %v750
        %v756 = vmul.f32 %v744, %v750
        %v757 = vmul.f32 %v745, %v750
        %v758 = vmul.f32 %v746, %v750
        %v759 = vlaneseq
        %v760 = vshrl.u32 %v759, 7
        %v761 = vsub.s32 2, %v760
        %v762 = vrot.slane %v315, %v761
        %v763 = vadd.f32 %v751, %v762
        %v764 = vadd.f32 %v752, %v762
        %v765 = vadd.f32 %v753, %v762
        %v766 = vadd.f32 %v754, %v762
        %v767 = vadd.f32 %v755, %v762
        %v768 = vadd.f32 %v756, %v762
        %v769 = vadd.f32 %v757, %v762
        %v770 = vadd.f32 %v758, %v762
        %771 = vst [vmem:[%s311] sm:$0xff] %v763
        %772 = vst [vmem:[%s311 + $0x8] sm:$0xff] %v764
        %773 = vst [vmem:[%s311 + $0x10] sm:$0xff] %v765
        %774 = vst [vmem:[%s311 + $0x18] sm:$0xff] %v766
        %775 = vst [vmem:[%s311 + $0x20] sm:$0xff] %v767
        %776 = vst [vmem:[%s311 + $0x28] sm:$0xff] %v768
        %777 = vst [vmem:[%s311 + $0x30] sm:$0xff] %v769
        %778 = vst [vmem:[%s311 + $0x38] sm:$0xff] %v770
        %s779 = sand.u32 %s149, 1
        %s780 = scalar_lea.sflag [#allocation4], %s779
        %s781 = sand.u32 %s149, 1
        %s782 = smul.addr %s781, 64
        %s783 = scalar_lea.vmem [#allocation10], %s782
        // Predicated region
        $region57: #{tpu_custom_call.1} parent=39 // pred_check
          %p784 = pneg %p159
        $region58: #{tpu_custom_call.1} parent=39 // pred_check_branch
          %786 = sbr.rel (%p784) target = $region60
        $region59: #{tpu_custom_call.1} parent=39 // pred_region
          %s787 = smul.u32 8, %s26
          %s789 = ssub.s32 1024, 1024
          %790 = vsyncadd %s780, %s789
          %s791 = smul.addr %s787, 128
          %s792 = scalar_lea.hbm %s5, %s791
          %s793 = sshll.u32 %s783, 4
          %s794 = int_to_ptr.vmem [resolvable:$true] %s793
          %799 = dma.vmem_to_hbm [thread:$0]  %s794, 1024, %s792, %s780, 128, 128, 8
        $region60: #{tpu_custom_call.1} parent=39 // pred_fallthru
          _
      $region40: #{tpu_custom_call.1} parent=5 // pred_fallthru
        _
      %p800 = scmp.le.s32.totalorder 2, %s21
      // Predicated region
      $region61: #{tpu_custom_call.1} parent=5 // pred_check
        %p801 = pneg %p800
      $region62: #{tpu_custom_call.1} parent=5 // pred_check_branch
        %803 = sbr.rel (%p801) target = $region64
      $region63: #{tpu_custom_call.1} parent=5 // pred_region
        %s804 = ssub.s32 %s21, 2
        // Predicated region
        $region65: #{tpu_custom_call.1} parent=63 // pred_check
          %p805 = pneg %p165
        $region66: #{tpu_custom_call.1} parent=63 // pred_check_branch
          %807 = sbr.rel (%p805) target = $region68
        $region67: #{tpu_custom_call.1} parent=63 // pred_region
          %s808 = sand.u32 %s150, 1
          %s809 = scalar_lea.sflag [#allocation4], %s808
          %s810 = sand.u32 %s150, 1
          %s811 = smul.addr %s810, 64
          %s812 = scalar_lea.vmem [#allocation10], %s811
          %813 = dma.done %s809, 1024
        $region68: #{tpu_custom_call.1} parent=63 // pred_fallthru
          _
      $region64: #{tpu_custom_call.1} parent=5 // pred_fallthru
        _
    $region6: #{tpu_custom_call.1} parent=1 // loop_footer
      %s25 = sadd.s32 1, %s21
    $region7: #{tpu_custom_call.1} parent=1 // loop_footer_branch
      %20 = sbr.rel target = $region3
    $region8: #{tpu_custom_call.1} parent=1 // loop_exit
      _
    %814 = vsyncpa [#allocation3], 1
    %s815 = scalar_lea.sflag [#allocation3], 1
    %816 = vsyncpa %s815, 1
    %817 = vsyncpa [#allocation6], 1
    %s818 = scalar_lea.sflag [#allocation6], 1
    %819 = vsyncpa %s818, 1
    %820 = vsyncpa [#allocation9], 1
    %821 = vsyncpa [#allocation4], 1
    %s822 = scalar_lea.sflag [#allocation4], 1
    %823 = vsyncpa %s822, 1

</llo_original>
